<compile_context>
chip_gen: v5e
topology: v5e:2x2
jax: 0.10.0
libtpu: 0.0.40
codegen_flags: <defaults>
</compile_context>

<pallas_src>
import jax
import jax.numpy as jnp
from jax.experimental import pallas as pl
from jax.experimental.pallas import tpu as pltpu

N_IN = 16
N_H1 = 32
N_H2 = 64
N_OUT = 81      # true output width of linear3
N_PAD = 128     # lane-dense padded output width
LANE = 128
TM_MAX = 2048   # max batch columns per grid step (VMEM is not a constraint here)


def _round_up(n, m):
    return ((n + m - 1) // m) * m


def dqn_kernel(xT_ref, w1t_ref, b1_ref, w2t_ref, b2_ref, w3t_ref, b3_ref, oT_ref):
    # xT_ref: (16, TM) bf16, wKt_ref: (out, in) bf16, bK_ref: (out, 1) f32, oT_ref: (128, TM) f32.
    # linear1 + LeakyReLU(0.1)
    h1 = jnp.dot(w1t_ref[...], xT_ref[...], preferred_element_type=jnp.float32)   # (32, TM) f32
    h1 = h1 + b1_ref[...]                                                          # (32,1) bcast
    h1 = jnp.maximum(h1, 0.1 * h1)

    # linear2 + LeakyReLU(0.1)
    h2 = jnp.dot(w2t_ref[...], h1.astype(jnp.bfloat16),
                 preferred_element_type=jnp.float32)                               # (64, TM) f32
    h2 = h2 + b2_ref[...]
    h2 = jnp.maximum(h2, 0.1 * h2)

    # linear3 (no activation); rows 81..127 are zero weights/bias, sliced off in the wrapper.
    h3 = jnp.dot(w3t_ref[...], h2.astype(jnp.bfloat16),
                 preferred_element_type=jnp.float32)                               # (128, TM) f32
    oT_ref[...] = (h3 + b3_ref[...]).astype(oT_ref.dtype)


def _batch_tiles(batch):
    """Split batch into n near-equal lane-aligned tiles; even n for v7x megacore once batch>512."""
    n = max(1, pl.cdiv(batch, TM_MAX))
    if batch > 512:
        n = max(n, 2)
        if n % 2:
            n += 1
    tm = max(LANE, _round_up(pl.cdiv(batch, n), LANE))
    return n, tm


def prepare_params(params):
    """One-time conversion for the kernel: weights -> (out, in) bf16, biases -> (out, 1) f32,
    last layer zero-padded from 81 to 128 output lanes."""
    w3p = jnp.pad(params["w3"], ((0, 0), (0, N_PAD - N_OUT)))
    b3p = jnp.pad(params["b3"], ((0, 0), (0, N_PAD - N_OUT)))
    return {
        "w1t": params["w1"].T.astype(jnp.bfloat16),    # (32, 16)
        "b1": params["b1"].reshape(N_H1, 1),           # (32, 1) f32
        "w2t": params["w2"].T.astype(jnp.bfloat16),    # (64, 32)
        "b2": params["b2"].reshape(N_H2, 1),           # (64, 1) f32
        "w3t": w3p.T.astype(jnp.bfloat16),             # (128, 64)
        "b3": b3p.reshape(N_PAD, 1),                   # (128, 1) f32
    }


@jax.jit
def dqn_forward(x, kp):
    """x: (B, 16) float32; kp: prepare_params(...) output. Returns (B, 81) float32."""
    B = x.shape[0]
    n_tiles, tm = _batch_tiles(B)
    b_pad = n_tiles * tm

    xT = x.T.astype(jnp.bfloat16)                      # (16, B): batch on the lane axis
    if b_pad != B:
        xT = jnp.pad(xT, ((0, 0), (0, b_pad - B)))

    def resident(arr):
        # Same block every grid step -> single DMA, stays VMEM-resident across the grid.
        return pl.BlockSpec(arr.shape, lambda i: (0, 0))

    outT = pl.pallas_call(
        dqn_kernel,
        out_shape=jax.ShapeDtypeStruct((N_PAD, b_pad), jnp.float32),
        grid=(n_tiles,),
        in_specs=[
            pl.BlockSpec((N_IN, tm), lambda i: (0, i)),   # x^T: tiled along batch (lanes)
            resident(kp["w1t"]), resident(kp["b1"]),
            resident(kp["w2t"]), resident(kp["b2"]),
            resident(kp["w3t"]), resident(kp["b3"]),
        ],
        out_specs=pl.BlockSpec((N_PAD, tm), lambda i: (0, i)),
        compiler_params=pltpu.CompilerParams(
            dimension_semantics=("parallel",),
        ),
    )(xT, kp["w1t"], kp["b1"], kp["w2t"], kp["b2"], kp["w3t"], kp["b3"])

    # Fused to a single copy under jit. Consumers that can take the padded (128, B) slab
    # directly should read outT instead and skip this pass.
    return outT[:N_OUT, :B].T


def init_params(key):
    """Weights: kaiming_normal_(fan_in, leaky_relu, a=0) -> std = sqrt(2/fan_in), stored (in, out).
    Biases: PyTorch default Linear bias init, uniform(-1/sqrt(fan_in), 1/sqrt(fan_in)), shape (1, out)."""
    dims = [(N_IN, N_H1), (N_H1, N_H2), (N_H2, N_OUT)]
    params = {}
    for i, (fan_in, fan_out) in enumerate(dims, start=1):
        key, kw, kb = jax.random.split(key, 3)
        std = (2.0 / fan_in) ** 0.5
        params[f"w{i}"] = (std * jax.random.normal(kw, (fan_in, fan_out))).astype(jnp.float32)
        bound = 1.0 / (fan_in ** 0.5)
        params[f"b{i}"] = jax.random.uniform(
            kb, (1, fan_out), minval=-bound, maxval=bound
        ).astype(jnp.float32)
    return params


def dqn_reference(x, params):
    def lrelu(v):
        return jnp.maximum(v, 0.1 * v)
    h = lrelu(x @ params["w1"] + params["b1"])
    h = lrelu(h @ params["w2"] + params["b2"])
    return h @ params["w3"] + params["b3"]


if __name__ == "__main__":
    key = jax.random.PRNGKey(0)
    k_params, kx1, kx2 = jax.random.split(key, 3)
    params = init_params(k_params)
    kparams = prepare_params(params)

    # bf16 MXU operands with f32 accumulation -> compare to the full-f32 reference with a
    # relaxed tolerance (worst-case per-element error through 3 layers is a few 1e-2).
    def check(B, kx):
        x = jax.random.normal(kx, (B, N_IN), dtype=jnp.float32)
        out = jax.block_until_ready(dqn_forward(x, kparams))
        ref = dqn_reference(x, params)
        assert out.shape == (B, N_OUT)
        assert jnp.allclose(out, ref, atol=5e-2, rtol=5e-2), (
            f"mismatch vs f32 reference at B={B}: "
            f"max abs diff {float(jnp.max(jnp.abs(out - ref)))}"
        )

    check(8, kx1)      # small serving-style batch: single grid step
    check(2050, kx2)   # replay-style batch: 2 balanced tiles of 1152 columns (multi-step grid)
    print("KERNEL_OK")
</pallas_src>

<mosaic_0001>
module attributes {stable_mosaic.version = 11 : i64} {
  func.func @dqn_kernel(%arg0: i32, %arg1: memref<16x128xbf16, #tpu.memory_space<vmem>>, %arg2: memref<32x16xbf16, #tpu.memory_space<vmem>>, %arg3: memref<32x1xf32, #tpu.memory_space<vmem>>, %arg4: memref<64x32xbf16, #tpu.memory_space<vmem>>, %arg5: memref<64x1xf32, #tpu.memory_space<vmem>>, %arg6: memref<128x64xbf16, #tpu.memory_space<vmem>>, %arg7: memref<128x1xf32, #tpu.memory_space<vmem>>, %arg8: memref<128x128xf32, #tpu.memory_space<vmem>>) attributes {dimension_semantics = [#tpu.dimension_semantics<parallel>], iteration_bounds = array<i64: 1>, scalar_prefetch = 0 : i64, scratch_operands = 0 : i64, tpu.core_type = #tpu.core_type<tc>, window_params = [{transform_indices = @transform_0, window_bounds = array<i64: 16, 128>}, {pipeline_mode = #tpu.pipeline_mode<synchronous>, transform_indices = @transform_1, window_bounds = array<i64: 32, 16>}, {pipeline_mode = #tpu.pipeline_mode<synchronous>, transform_indices = @transform_2, window_bounds = array<i64: 32, 1>}, {pipeline_mode = #tpu.pipeline_mode<synchronous>, transform_indices = @transform_3, window_bounds = array<i64: 64, 32>}, {pipeline_mode = #tpu.pipeline_mode<synchronous>, transform_indices = @transform_4, window_bounds = array<i64: 64, 1>}, {pipeline_mode = #tpu.pipeline_mode<synchronous>, transform_indices = @transform_5, window_bounds = array<i64: 128, 64>}, {pipeline_mode = #tpu.pipeline_mode<synchronous>, transform_indices = @transform_6, window_bounds = array<i64: 128, 1>}, {transform_indices = @transform_7, window_bounds = array<i64: 128, 128>}]} {
    %c0 = arith.constant 0 : index
    %c0_0 = arith.constant 0 : index
    %0 = vector.load %arg2[%c0, %c0_0] : memref<32x16xbf16, #tpu.memory_space<vmem>>, vector<32x16xbf16>
    %c0_1 = arith.constant 0 : index
    %c0_2 = arith.constant 0 : index
    %1 = vector.load %arg1[%c0_1, %c0_2] : memref<16x128xbf16, #tpu.memory_space<vmem>>, vector<16x128xbf16>
    %cst = arith.constant dense<0.000000e+00> : vector<32x128xf32>
    %2 = tpu.matmul %0, %1, %cst {dimension_numbers = #tpu.dot_dimension_numbers<[1], [0], [0], [1], [0, 0, 1, 1], [], []>} : vector<32x16xbf16>, vector<16x128xbf16>, vector<32x128xf32> -> vector<32x128xf32>
    %c0_3 = arith.constant 0 : index
    %c0_4 = arith.constant 0 : index
    %3 = vector.load %arg3[%c0_3, %c0_4] : memref<32x1xf32, #tpu.memory_space<vmem>>, vector<32x1xf32>
    %4 = vector.broadcast %3 : vector<32x1xf32> to vector<32x128xf32>
    %5 = arith.addf %2, %4 : vector<32x128xf32>
    %cst_5 = arith.constant 1.000000e-01 : f32
    %6 = vector.broadcast %cst_5 : f32 to vector<32x128xf32>
    %7 = arith.mulf %6, %5 : vector<32x128xf32>
    %8 = arith.maximumf %5, %7 : vector<32x128xf32>
    %c0_6 = arith.constant 0 : index
    %c0_7 = arith.constant 0 : index
    %9 = vector.load %arg4[%c0_6, %c0_7] : memref<64x32xbf16, #tpu.memory_space<vmem>>, vector<64x32xbf16>
    %10 = arith.truncf %8 : vector<32x128xf32> to vector<32x128xbf16>
    %cst_8 = arith.constant dense<0.000000e+00> : vector<64x128xf32>
    %11 = tpu.matmul %9, %10, %cst_8 {dimension_numbers = #tpu.dot_dimension_numbers<[1], [0], [0], [1], [0, 0, 1, 1], [], []>} : vector<64x32xbf16>, vector<32x128xbf16>, vector<64x128xf32> -> vector<64x128xf32>
    %c0_9 = arith.constant 0 : index
    %c0_10 = arith.constant 0 : index
    %12 = vector.load %arg5[%c0_9, %c0_10] : memref<64x1xf32, #tpu.memory_space<vmem>>, vector<64x1xf32>
    %13 = vector.broadcast %12 : vector<64x1xf32> to vector<64x128xf32>
    %14 = arith.addf %11, %13 : vector<64x128xf32>
    %cst_11 = arith.constant 1.000000e-01 : f32
    %15 = vector.broadcast %cst_11 : f32 to vector<64x128xf32>
    %16 = arith.mulf %15, %14 : vector<64x128xf32>
    %17 = arith.maximumf %14, %16 : vector<64x128xf32>
    %c0_12 = arith.constant 0 : index
    %c0_13 = arith.constant 0 : index
    %18 = vector.load %arg6[%c0_12, %c0_13] : memref<128x64xbf16, #tpu.memory_space<vmem>>, vector<128x64xbf16>
    %19 = arith.truncf %17 : vector<64x128xf32> to vector<64x128xbf16>
    %cst_14 = arith.constant dense<0.000000e+00> : vector<128x128xf32>
    %20 = tpu.matmul %18, %19, %cst_14 {dimension_numbers = #tpu.dot_dimension_numbers<[1], [0], [0], [1], [0, 0, 1, 1], [], []>} : vector<128x64xbf16>, vector<64x128xbf16>, vector<128x128xf32> -> vector<128x128xf32>
    %c0_15 = arith.constant 0 : index
    %c0_16 = arith.constant 0 : index
    %21 = vector.load %arg7[%c0_15, %c0_16] : memref<128x1xf32, #tpu.memory_space<vmem>>, vector<128x1xf32>
    %22 = vector.broadcast %21 : vector<128x1xf32> to vector<128x128xf32>
    %23 = arith.addf %20, %22 : vector<128x128xf32>
    %c0_17 = arith.constant 0 : index
    %c0_18 = arith.constant 0 : index
    %24 = vector.load %arg8[%c0_17, %c0_18] : memref<128x128xf32, #tpu.memory_space<vmem>>, vector<128x128xf32>
    tpu.vector_store %arg8[%c0_17, %c0_18], %23 {strides = array<i32>} : memref<128x128xf32, #tpu.memory_space<vmem>>, vector<128x128xf32>,
    return
  }
  func.func @transform_0(%arg0: i32) -> (i32, i32) {
    %c0_i32 = arith.constant 0 : i32
    %c0_i32_0 = arith.constant 0 : i32
    return %c0_i32, %arg0 : i32, i32
  }
  func.func @transform_1(%arg0: i32) -> (i32, i32) {
    %c0_i32 = arith.constant 0 : i32
    %c0_i32_0 = arith.constant 0 : i32
    %c0_i32_1 = arith.constant 0 : i32
    return %c0_i32, %c0_i32_0 : i32, i32
  }
  func.func @transform_2(%arg0: i32) -> (i32, i32) {
    %c0_i32 = arith.constant 0 : i32
    %c0_i32_0 = arith.constant 0 : i32
    %c0_i32_1 = arith.constant 0 : i32
    return %c0_i32, %c0_i32_0 : i32, i32
  }
  func.func @transform_3(%arg0: i32) -> (i32, i32) {
    %c0_i32 = arith.constant 0 : i32
    %c0_i32_0 = arith.constant 0 : i32
    %c0_i32_1 = arith.constant 0 : i32
    return %c0_i32, %c0_i32_0 : i32, i32
  }
  func.func @transform_4(%arg0: i32) -> (i32, i32) {
    %c0_i32 = arith.constant 0 : i32
    %c0_i32_0 = arith.constant 0 : i32
    %c0_i32_1 = arith.constant 0 : i32
    return %c0_i32, %c0_i32_0 : i32, i32
  }
  func.func @transform_5(%arg0: i32) -> (i32, i32) {
    %c0_i32 = arith.constant 0 : i32
    %c0_i32_0 = arith.constant 0 : i32
    %c0_i32_1 = arith.constant 0 : i32
    return %c0_i32, %c0_i32_0 : i32, i32
  }
  func.func @transform_6(%arg0: i32) -> (i32, i32) {
    %c0_i32 = arith.constant 0 : i32
    %c0_i32_0 = arith.constant 0 : i32
    %c0_i32_1 = arith.constant 0 : i32
    return %c0_i32, %c0_i32_0 : i32, i32
  }
  func.func @transform_7(%arg0: i32) -> (i32, i32) {
    %c0_i32 = arith.constant 0 : i32
    %c0_i32_0 = arith.constant 0 : i32
    return %c0_i32, %arg0 : i32, i32
  }
}

</mosaic_0001>

<llo_original>
// kernel: dqn_forward.1
$region0: #{dqn_forward.1}
  #allocation0 [shape = 'u32[]', space=smem, size = 0x4, offset = 0x4, fixed_abs, tag = 'smem constant byte address 0x4 - core index']
  #allocation1 [shape = 'u32[72,128]{1,0:T(1,128)}', space=vmem, size = 0x9000, scoped, tag = 'internal scratch']
  %s0 = inlined_call_operand.vmem [shape: bf16[16,128], index: 0, kind: input, shape index: {}]
  %s1 = inlined_call_operand.vmem [shape: bf16[32,16], index: 1, kind: input, shape index: {}]
  %s2 = inlined_call_operand.vmem [shape: f32[32,1], index: 2, kind: input, shape index: {}]
  %s3 = inlined_call_operand.vmem [shape: bf16[64,32], index: 3, kind: input, shape index: {}]
  %s4 = inlined_call_operand.vmem [shape: f32[64,1], index: 4, kind: input, shape index: {}]
  %s5 = inlined_call_operand.vmem [shape: bf16[128,64], index: 5, kind: input, shape index: {}]
  %s6 = inlined_call_operand.vmem [shape: f32[128,1], index: 6, kind: input, shape index: {}]
  %s7 = inlined_call_operand.vmem [shape: f32[128,128], index: 7, kind: output, shape index: {}]
  %s8 = sld [smem:[#allocation0]]
  $region38: #{dqn_forward.1} parent=0
    _
  %s10 = ssub.s32 1, %s8
  %s11 = scalar_select 0, %s10, %s8
  // Predicated region
  $region2: #{dqn_forward.1} parent=0 // pred_check
    _
  $region3: #{dqn_forward.1} parent=0 // pred_check_branch
    %13 = sbr.rel (0) target = $region5
  $region4: #{dqn_forward.1} parent=0 // pred_region
    _
  $region5: #{dqn_forward.1} parent=0 // pred_fallthru
    _
  // Predicated region
  $region6: #{dqn_forward.1} parent=0 // pred_check
    _
  $region7: #{dqn_forward.1} parent=0 // pred_check_branch
    %15 = sbr.rel (0) target = $region9
  $region8: #{dqn_forward.1} parent=0 // pred_region
    _
  $region9: #{dqn_forward.1} parent=0 // pred_fallthru
    _
  // Predicated region
  $region10: #{dqn_forward.1} parent=0 // pred_check
    _
  $region11: #{dqn_forward.1} parent=0 // pred_check_branch
    %17 = sbr.rel (0) target = $region13
  $region12: #{dqn_forward.1} parent=0 // pred_region
    _
  $region13: #{dqn_forward.1} parent=0 // pred_fallthru
    _
  // Predicated region
  $region14: #{dqn_forward.1} parent=0 // pred_check
    _
  $region15: #{dqn_forward.1} parent=0 // pred_check_branch
    %19 = sbr.rel (0) target = $region17
  $region16: #{dqn_forward.1} parent=0 // pred_region
    _
  $region17: #{dqn_forward.1} parent=0 // pred_fallthru
    _
  // Predicated region
  $region18: #{dqn_forward.1} parent=0 // pred_check
    _
  $region19: #{dqn_forward.1} parent=0 // pred_check_branch
    %21 = sbr.rel (0) target = $region21
  $region20: #{dqn_forward.1} parent=0 // pred_region
    _
  $region21: #{dqn_forward.1} parent=0 // pred_fallthru
    _
  // Predicated region
  $region22: #{dqn_forward.1} parent=0 // pred_check
    _
  $region23: #{dqn_forward.1} parent=0 // pred_check_branch
    %23 = sbr.rel (0) target = $region25
  $region24: #{dqn_forward.1} parent=0 // pred_region
    _
  $region25: #{dqn_forward.1} parent=0 // pred_fallthru
    _
  // Predicated region
  $region26: #{dqn_forward.1} parent=0 // pred_check
    _
  $region27: #{dqn_forward.1} parent=0 // pred_check_branch
    %25 = sbr.rel (0) target = $region29
  $region28: #{dqn_forward.1} parent=0 // pred_region
    _
  $region29: #{dqn_forward.1} parent=0 // pred_fallthru
    _
  %v27 = vld [vmem:[%s1] sm:$0xf]
  %v28 = vld [vmem:[%s1 + $0x4] sm:$0xf]
  %v29 = vld [vmem:[%s1 + $0x8] sm:$0xf]
  %v30 = vld [vmem:[%s1 + $0xc] sm:$0xf]
  %v31 = vld [vmem:[%s0] sm:$0xf]
  %v32 = vld [vmem:[%s0 + $0x4] sm:$0xf]
  %v33 = vld [vmem:[%s2] sm:$0xff]
  %v34 = vld [vmem:[%s2 + $0x8] sm:$0xff]
  %v35 = vld [vmem:[%s2 + $0x10] sm:$0xff]
  %v36 = vld [vmem:[%s2 + $0x18] sm:$0xff]
  %38 = vset.pattern.permute.xlu0 0
  %39 = vperm.xlu0 %38, %v33
  %v40 = vpop.permute.xlu0 %39
  %43 = vset.pattern.permute.xlu0 0
  %44 = vperm.xlu0 %43, %v34
  %v45 = vpop.permute.xlu0 %44
  %48 = vset.pattern.permute.xlu0 0
  %49 = vperm.xlu0 %48, %v35
  %v50 = vpop.permute.xlu0 %49
  %53 = vset.pattern.permute.xlu0 0
  %54 = vperm.xlu0 %53, %v36
  %v55 = vpop.permute.xlu0 %54
  %v61 = vunpack.c.l.b16 %v27
  %v62 = vunpack.c.l.b16 %v28
  %v63 = vunpack.c.l.b16 %v29
  %v64 = vunpack.c.l.b16 %v30
  %v65 = vpack.c.b16 %v62, %v61
  %v66 = vpack.c.b16 %v64, %v63
  %v69 = vunpack.c.l.b16 %v31
  %v70 = vunpack.c.l.b16 %v32
  %v71 = vpack.c.b16 %v70, %v69
  %vm73 = vcmask 130048
  %v75 = vsel %vm73, %v65, 0
  %v78 = vsel %vm73, %v66, 0
  %80 = vmatpush.bf16.msra.mxu0 0
  %81 = vmatpush.bf16.msra.mxu0 0
  %82 = vmatpush.bf16.msra.mxu0 0
  %83 = vmatpush.bf16.msra.mxu0 0
  %84 = vmatpush.bf16.msra.mxu0 0
  %85 = vmatpush.bf16.msra.mxu0 0
  %86 = vmatpush.bf16.msra.mxu0 0
  %87 = vmatpush.bf16.msra.mxu0 %v71
  %88 = vmatmul.bf16.gmra.mxu0 %v75
  %v89 = vpop.f32.mrf.mxu0
  %v90 = vadd.f32 %v40, %v89
  %v91 = vpop.f32.mrf.mxu0
  %v92 = vadd.f32 %v45, %v91
  %93 = vmatmul.bf16.gmra.mxu0 %v78
  %v94 = vpop.f32.mrf.mxu0
  %v95 = vadd.f32 %v50, %v94
  %v96 = vpop.f32.mrf.mxu0
  %v97 = vadd.f32 %v55, %v96
  %98 = vdwg.mxu0
  %v99 = vmul.f32 %v90, 0.1
  %v100 = vmul.f32 %v92, 0.1
  %v101 = vmul.f32 %v95, 0.1
  %v102 = vmul.f32 %v97, 0.1
  %v103 = vmax.f32 %v90, %v99
  %v104 = vmax.f32 %v92, %v100
  %v105 = vmax.f32 %v95, %v101
  %v106 = vmax.f32 %v97, %v102
  %v107 = vld [vmem:[%s3] sm:$0xf]
  %v108 = vld [vmem:[%s3 + $0x4] sm:$0xf]
  %v109 = vld [vmem:[%s3 + $0x8] sm:$0xf]
  %v110 = vld [vmem:[%s3 + $0xc] sm:$0xf]
  %v111 = vld [vmem:[%s3 + $0x10] sm:$0xf]
  %v112 = vld [vmem:[%s3 + $0x14] sm:$0xf]
  %v113 = vld [vmem:[%s3 + $0x18] sm:$0xf]
  %v114 = vld [vmem:[%s3 + $0x1c] sm:$0xf]
  %v115 = vpack.c.bf16 %v104, %v103
  %v116 = vpack.c.bf16 %v106, %v105
  %v117 = vld [vmem:[%s4] sm:$0xff]
  %v118 = vld [vmem:[%s4 + $0x8] sm:$0xff]
  %v119 = vld [vmem:[%s4 + $0x10] sm:$0xff]
  %v120 = vld [vmem:[%s4 + $0x18] sm:$0xff]
  %v121 = vld [vmem:[%s4 + $0x20] sm:$0xff]
  %v122 = vld [vmem:[%s4 + $0x28] sm:$0xff]
  %v123 = vld [vmem:[%s4 + $0x30] sm:$0xff]
  %v124 = vld [vmem:[%s4 + $0x38] sm:$0xff]
  %126 = vset.pattern.permute.xlu0 0
  %127 = vperm.xlu0 %126, %v117
  %v128 = vpop.permute.xlu0 %127
  %131 = vset.pattern.permute.xlu0 0
  %132 = vperm.xlu0 %131, %v118
  %v133 = vpop.permute.xlu0 %132
  %136 = vset.pattern.permute.xlu0 0
  %137 = vperm.xlu0 %136, %v119
  %v138 = vpop.permute.xlu0 %137
  %141 = vset.pattern.permute.xlu0 0
  %142 = vperm.xlu0 %141, %v120
  %v143 = vpop.permute.xlu0 %142
  %146 = vset.pattern.permute.xlu0 0
  %147 = vperm.xlu0 %146, %v121
  %v148 = vpop.permute.xlu0 %147
  %151 = vset.pattern.permute.xlu0 0
  %152 = vperm.xlu0 %151, %v122
  %v153 = vpop.permute.xlu0 %152
  %156 = vset.pattern.permute.xlu0 0
  %157 = vperm.xlu0 %156, %v123
  %v158 = vpop.permute.xlu0 %157
  %161 = vset.pattern.permute.xlu0 0
  %162 = vperm.xlu0 %161, %v124
  %v163 = vpop.permute.xlu0 %162
  %v173 = vunpack.c.l.b16 %v107
  %v174 = vunpack.c.l.b16 %v108
  %v175 = vunpack.c.l.b16 %v109
  %v176 = vunpack.c.l.b16 %v110
  %v177 = vunpack.c.l.b16 %v111
  %v178 = vunpack.c.l.b16 %v112
  %v179 = vunpack.c.l.b16 %v113
  %v180 = vunpack.c.l.b16 %v114
  %v181 = vpack.c.b16 %v174, %v173
  %v182 = vpack.c.b16 %v176, %v175
  %v183 = vpack.c.b16 %v178, %v177
  %v184 = vpack.c.b16 %v180, %v179
  %vm185 = vcmask 261120
  %v187 = vsel %vm185, %v181, 0
  %v190 = vsel %vm185, %v182, 0
  %v193 = vsel %vm185, %v183, 0
  %v196 = vsel %vm185, %v184, 0
  %198 = vmatpush.bf16.msra.mxu0 0
  %199 = vmatpush.bf16.msra.mxu0 0
  %200 = vmatpush.bf16.msra.mxu0 0
  %201 = vmatpush.bf16.msra.mxu0 0
  %202 = vmatpush.bf16.msra.mxu0 0
  %203 = vmatpush.bf16.msra.mxu0 0
  %204 = vmatpush.bf16.msra.mxu0 %v116
  %205 = vmatpush.bf16.msra.mxu0 %v115
  %206 = vmatmul.bf16.gmra.mxu0 %v187
  %v207 = vpop.f32.mrf.mxu0
  %v208 = vadd.f32 %v128, %v207
  %v209 = vpop.f32.mrf.mxu0
  %v210 = vadd.f32 %v133, %v209
  %211 = vmatmul.bf16.gmra.mxu0 %v190
  %v212 = vpop.f32.mrf.mxu0
  %v213 = vadd.f32 %v138, %v212
  %v214 = vpop.f32.mrf.mxu0
  %v215 = vadd.f32 %v143, %v214
  %216 = vmatmul.bf16.gmra.mxu0 %v193
  %v217 = vpop.f32.mrf.mxu0
  %v218 = vadd.f32 %v148, %v217
  %v219 = vpop.f32.mrf.mxu0
  %v220 = vadd.f32 %v153, %v219
  %221 = vmatmul.bf16.gmra.mxu0 %v196
  %v222 = vpop.f32.mrf.mxu0
  %v223 = vadd.f32 %v158, %v222
  %v224 = vpop.f32.mrf.mxu0
  %v225 = vadd.f32 %v163, %v224
  %226 = vdwg.mxu0
  %v227 = vmul.f32 %v208, 0.1
  %v228 = vmul.f32 %v210, 0.1
  %v229 = vmul.f32 %v213, 0.1
  %v230 = vmul.f32 %v215, 0.1
  %v231 = vmul.f32 %v218, 0.1
  %v232 = vmul.f32 %v220, 0.1
  %v233 = vmul.f32 %v223, 0.1
  %v234 = vmul.f32 %v225, 0.1
  %v235 = vmax.f32 %v208, %v227
  %v236 = vmax.f32 %v210, %v228
  %v237 = vmax.f32 %v213, %v229
  %v238 = vmax.f32 %v215, %v230
  %v239 = vmax.f32 %v218, %v231
  %v240 = vmax.f32 %v220, %v232
  %v241 = vmax.f32 %v223, %v233
  %v242 = vmax.f32 %v225, %v234
  %v243 = vld [vmem:[%s5] sm:$0xf]
  %v244 = vld [vmem:[%s5 + $0x4] sm:$0xf]
  %v245 = vld [vmem:[%s5 + $0x8] sm:$0xf]
  %v246 = vld [vmem:[%s5 + $0xc] sm:$0xf]
  %v247 = vld [vmem:[%s5 + $0x10] sm:$0xf]
  %v248 = vld [vmem:[%s5 + $0x14] sm:$0xf]
  %v249 = vld [vmem:[%s5 + $0x18] sm:$0xf]
  %v250 = vld [vmem:[%s5 + $0x1c] sm:$0xf]
  %v251 = vld [vmem:[%s5 + $0x20] sm:$0xf]
  %v252 = vld [vmem:[%s5 + $0x24] sm:$0xf]
  %v253 = vld [vmem:[%s5 + $0x28] sm:$0xf]
  %v254 = vld [vmem:[%s5 + $0x2c] sm:$0xf]
  %v255 = vld [vmem:[%s5 + $0x30] sm:$0xf]
  %v256 = vld [vmem:[%s5 + $0x34] sm:$0xf]
  %v257 = vld [vmem:[%s5 + $0x38] sm:$0xf]
  %v258 = vld [vmem:[%s5 + $0x3c] sm:$0xf]
  %v259 = vpack.c.bf16 %v236, %v235
  %v260 = vpack.c.bf16 %v238, %v237
  %v261 = vpack.c.bf16 %v240, %v239
  %v262 = vpack.c.bf16 %v242, %v241
  %v263 = vld [vmem:[%s6] sm:$0xff]
  %v264 = vld [vmem:[%s6 + $0x8] sm:$0xff]
  %v265 = vld [vmem:[%s6 + $0x10] sm:$0xff]
  %v266 = vld [vmem:[%s6 + $0x18] sm:$0xff]
  %v267 = vld [vmem:[%s6 + $0x20] sm:$0xff]
  %v268 = vld [vmem:[%s6 + $0x28] sm:$0xff]
  %v269 = vld [vmem:[%s6 + $0x30] sm:$0xff]
  %v270 = vld [vmem:[%s6 + $0x38] sm:$0xff]
  %v271 = vld [vmem:[%s6 + $0x40] sm:$0xff]
  %v272 = vld [vmem:[%s6 + $0x48] sm:$0xff]
  %v273 = vld [vmem:[%s6 + $0x50] sm:$0xff]
  %v274 = vld [vmem:[%s6 + $0x58] sm:$0xff]
  %v275 = vld [vmem:[%s6 + $0x60] sm:$0xff]
  %v276 = vld [vmem:[%s6 + $0x68] sm:$0xff]
  %v277 = vld [vmem:[%s6 + $0x70] sm:$0xff]
  %v278 = vld [vmem:[%s6 + $0x78] sm:$0xff]
  %280 = vset.pattern.permute.xlu0 0
  %281 = vperm.xlu0 %280, %v263
  %v282 = vpop.permute.xlu0 %281
  %285 = vset.pattern.permute.xlu0 0
  %286 = vperm.xlu0 %285, %v264
  %v287 = vpop.permute.xlu0 %286
  %290 = vset.pattern.permute.xlu0 0
  %291 = vperm.xlu0 %290, %v265
  %v292 = vpop.permute.xlu0 %291
  %295 = vset.pattern.permute.xlu0 0
  %296 = vperm.xlu0 %295, %v266
  %v297 = vpop.permute.xlu0 %296
  %300 = vset.pattern.permute.xlu0 0
  %301 = vperm.xlu0 %300, %v267
  %v302 = vpop.permute.xlu0 %301
  %305 = vset.pattern.permute.xlu0 0
  %306 = vperm.xlu0 %305, %v268
  %v307 = vpop.permute.xlu0 %306
  %310 = vset.pattern.permute.xlu0 0
  %311 = vperm.xlu0 %310, %v269
  %v312 = vpop.permute.xlu0 %311
  %315 = vset.pattern.permute.xlu0 0
  %316 = vperm.xlu0 %315, %v270
  %v317 = vpop.permute.xlu0 %316
  %320 = vset.pattern.permute.xlu0 0
  %321 = vperm.xlu0 %320, %v271
  %v322 = vpop.permute.xlu0 %321
  %325 = vset.pattern.permute.xlu0 0
  %326 = vperm.xlu0 %325, %v272
  %v327 = vpop.permute.xlu0 %326
  %330 = vset.pattern.permute.xlu0 0
  %331 = vperm.xlu0 %330, %v273
  %v332 = vpop.permute.xlu0 %331
  %335 = vset.pattern.permute.xlu0 0
  %336 = vperm.xlu0 %335, %v274
  %v337 = vpop.permute.xlu0 %336
  %340 = vset.pattern.permute.xlu0 0
  %341 = vperm.xlu0 %340, %v275
  %v342 = vpop.permute.xlu0 %341
  %345 = vset.pattern.permute.xlu0 0
  %346 = vperm.xlu0 %345, %v276
  %v347 = vpop.permute.xlu0 %346
  %350 = vset.pattern.permute.xlu0 0
  %351 = vperm.xlu0 %350, %v277
  %v352 = vpop.permute.xlu0 %351
  %355 = vset.pattern.permute.xlu0 0
  %356 = vperm.xlu0 %355, %v278
  %v357 = vpop.permute.xlu0 %356
  %v375 = vunpack.c.l.b16 %v243
  %v376 = vunpack.c.l.b16 %v244
  %v377 = vunpack.c.l.b16 %v245
  %v378 = vunpack.c.l.b16 %v246
  %v379 = vunpack.c.l.b16 %v247
  %v380 = vunpack.c.l.b16 %v248
  %v381 = vunpack.c.l.b16 %v249
  %v382 = vunpack.c.l.b16 %v250
  %v383 = vunpack.c.l.b16 %v251
  %v384 = vunpack.c.l.b16 %v252
  %v385 = vunpack.c.l.b16 %v253
  %v386 = vunpack.c.l.b16 %v254
  %v387 = vunpack.c.l.b16 %v255
  %v388 = vunpack.c.l.b16 %v256
  %v389 = vunpack.c.l.b16 %v257
  %v390 = vunpack.c.l.b16 %v258
  %v391 = vpack.c.b16 %v376, %v375
  %v392 = vpack.c.b16 %v378, %v377
  %v393 = vpack.c.b16 %v380, %v379
  %v394 = vpack.c.b16 %v382, %v381
  %v395 = vpack.c.b16 %v384, %v383
  %v396 = vpack.c.b16 %v386, %v385
  %v397 = vpack.c.b16 %v388, %v387
  %v398 = vpack.c.b16 %v390, %v389
  %vm399 = vcmask 523264
  %v401 = vsel %vm399, %v391, 0
  %v404 = vsel %vm399, %v392, 0
  %v407 = vsel %vm399, %v393, 0
  %v410 = vsel %vm399, %v394, 0
  %v413 = vsel %vm399, %v395, 0
  %v416 = vsel %vm399, %v396, 0
  %v419 = vsel %vm399, %v397, 0
  %v422 = vsel %vm399, %v398, 0
  %424 = vmatpush.bf16.msra.mxu0 0
  %425 = vmatpush.bf16.msra.mxu0 0
  %426 = vmatpush.bf16.msra.mxu0 0
  %427 = vmatpush.bf16.msra.mxu0 0
  %428 = vmatpush.bf16.msra.mxu0 %v262
  %429 = vmatpush.bf16.msra.mxu0 %v261
  %430 = vmatpush.bf16.msra.mxu0 %v260
  %431 = vmatpush.bf16.msra.mxu0 %v259
  %432 = vmatmul.bf16.gmra.mxu0 %v401
  %v433 = vpop.f32.mrf.mxu0
  %v434 = vadd.f32 %v282, %v433
  %v435 = vpop.f32.mrf.mxu0
  %v436 = vadd.f32 %v287, %v435
  %437 = vmatmul.bf16.gmra.mxu0 %v404
  %v438 = vpop.f32.mrf.mxu0
  %v439 = vadd.f32 %v292, %v438
  %v440 = vpop.f32.mrf.mxu0
  %v441 = vadd.f32 %v297, %v440
  %442 = vmatmul.bf16.gmra.mxu0 %v407
  %v443 = vpop.f32.mrf.mxu0
  %v444 = vadd.f32 %v302, %v443
  %v445 = vpop.f32.mrf.mxu0
  %v446 = vadd.f32 %v307, %v445
  %447 = vmatmul.bf16.gmra.mxu0 %v410
  %v448 = vpop.f32.mrf.mxu0
  %v449 = vadd.f32 %v312, %v448
  %v450 = vpop.f32.mrf.mxu0
  %v451 = vadd.f32 %v317, %v450
  %452 = vmatmul.bf16.gmra.mxu0 %v413
  %v453 = vpop.f32.mrf.mxu0
  %v454 = vadd.f32 %v322, %v453
  %v455 = vpop.f32.mrf.mxu0
  %v456 = vadd.f32 %v327, %v455
  %457 = vmatmul.bf16.gmra.mxu0 %v416
  %v458 = vpop.f32.mrf.mxu0
  %v459 = vadd.f32 %v332, %v458
  %v460 = vpop.f32.mrf.mxu0
  %v461 = vadd.f32 %v337, %v460
  %462 = vmatmul.bf16.gmra.mxu0 %v419
  %v463 = vpop.f32.mrf.mxu0
  %v464 = vadd.f32 %v342, %v463
  %v465 = vpop.f32.mrf.mxu0
  %v466 = vadd.f32 %v347, %v465
  %467 = vmatmul.bf16.gmra.mxu0 %v422
  %v468 = vpop.f32.mrf.mxu0
  %v469 = vadd.f32 %v352, %v468
  %v470 = vpop.f32.mrf.mxu0
  %v471 = vadd.f32 %v357, %v470
  %472 = vdwg.mxu0
  %473 = vst [vmem:[%s7] sm:$0xff] %v434
  %474 = vst [vmem:[%s7 + $0x8] sm:$0xff] %v436
  %475 = vst [vmem:[%s7 + $0x10] sm:$0xff] %v439
  %476 = vst [vmem:[%s7 + $0x18] sm:$0xff] %v441
  %477 = vst [vmem:[%s7 + $0x20] sm:$0xff] %v444
  %478 = vst [vmem:[%s7 + $0x28] sm:$0xff] %v446
  %479 = vst [vmem:[%s7 + $0x30] sm:$0xff] %v449
  %480 = vst [vmem:[%s7 + $0x38] sm:$0xff] %v451
  %481 = vst [vmem:[%s7 + $0x40] sm:$0xff] %v454
  %482 = vst [vmem:[%s7 + $0x48] sm:$0xff] %v456
  %483 = vst [vmem:[%s7 + $0x50] sm:$0xff] %v459
  %484 = vst [vmem:[%s7 + $0x58] sm:$0xff] %v461
  %485 = vst [vmem:[%s7 + $0x60] sm:$0xff] %v464
  %486 = vst [vmem:[%s7 + $0x68] sm:$0xff] %v466
  %487 = vst [vmem:[%s7 + $0x70] sm:$0xff] %v469
  %488 = vst [vmem:[%s7 + $0x78] sm:$0xff] %v471
  // Predicated region
  $region30: #{dqn_forward.1} parent=0 // pred_check
    _
  $region31: #{dqn_forward.1} parent=0 // pred_check_branch
    %490 = sbr.rel (0) target = $region33
  $region32: #{dqn_forward.1} parent=0 // pred_region
    _
  $region33: #{dqn_forward.1} parent=0 // pred_fallthru
    _
  // Predicated region
  $region34: #{dqn_forward.1} parent=0 // pred_check
    _
  $region35: #{dqn_forward.1} parent=0 // pred_check_branch
    %492 = sbr.rel (0) target = $region37
  $region36: #{dqn_forward.1} parent=0 // pred_region
    _
  $region37: #{dqn_forward.1} parent=0 // pred_fallthru
    _

</llo_original>
